<compile_context>
chip_gen: v7x
topology: tpu7x:2x2x1
jax: 0.10.0
libtpu: 0.0.40
codegen_flags: <defaults>
</compile_context>

<pallas_src>
import jax
import jax.numpy as jnp
from jax.experimental import pallas as pl
from jax.experimental.pallas import tpu as pltpu

EPS = 1e-5

# W_pack slot layout (6, 128, 128) bf16.
_W_FC2, _W_FC3, _W_ACT, _W_VFC1, _W_VFC2, _W_VOUT = range(6)

# B_pack row layout (16, 128) f32.
_B1, _G1, _BE1 = 0, 1, 2
_B2, _G2, _BE2 = 3, 4, 5
_B3 = 6
_BA = 7
_BV1, _GV1, _BEV1 = 8, 9, 10
_BV2, _GV2, _BEV2 = 11, 12, 13
_BVO = 14
_VAL_LANE = 6          # value is written into lane 6 of the output slab


def simplernet_kernel(x_ref, w1_ref, w_ref, b_ref, out_ref):
    P = b_ref[...]                                   # (16, 128) f32, resident

    def vec(row):
        return P[row:row + 1, :]                     # (1, 128) broadcast row

    def ln_relu(h, g_row, b_row, width):
        # h is (TB, 128) f32 with lanes >= width exactly zero; gamma/beta pad
        # lanes are zero, so pad lanes stay exactly zero after LN + ReLU.
        gamma, beta = vec(g_row), vec(b_row)
        inv_w = 1.0 / width
        mu = jnp.sum(h, axis=-1, keepdims=True) * inv_w
        e2 = jnp.sum(h * h, axis=-1, keepdims=True) * inv_w
        var = jnp.maximum(e2 - mu * mu, 0.0)
        s = gamma * jax.lax.rsqrt(var + EPS)         # gamma folded into scale
        return jnp.maximum(h * s + (beta - mu * s), 0.0)

    def dot(a_f32, slot):
        # bf16 MXU operands, f32 accumulation; full 128-lane padded width.
        return jnp.dot(a_f32.astype(jnp.bfloat16), w_ref[slot],
                       preferred_element_type=jnp.float32)

    # Input tile: (TB, 8) f32; columns >= 4 are ignored (W1 rows 4:8 are zero).
    x = x_ref[...].astype(jnp.bfloat16)

    # Shared trunk.
    h = jnp.dot(x, w1_ref[...], preferred_element_type=jnp.float32) + vec(_B1)
    h = ln_relu(h, _G1, _BE1, 128.0)
    h = dot(h, _W_FC2) + vec(_B2)
    h = ln_relu(h, _G2, _BE2, 64.0)
    h = jnp.maximum(dot(h, _W_FC3) + vec(_B3), 0.0)

    # Actor head: lanes 0:6 populated, rest exactly zero.
    logits = dot(h, _W_ACT) + vec(_BA)

    # Critic tail (use_dropout=False -> dropout is identity).
    v = ln_relu(dot(h, _W_VFC1) + vec(_BV1), _GV1, _BEV1, 64.0)
    v = ln_relu(dot(v, _W_VFC2) + vec(_BV2), _GV2, _BEV2, 32.0)
    val = dot(v, _W_VOUT) + vec(_BVO)                # value in lane 6, rest zero

    # Merged output slab: lanes 0:6 = logits, lane 6 = value, lane 7 = 0.
    out_ref[...] = (logits + val)[:, :8].astype(out_ref.dtype)


def init_params(key):
    """Deterministic PyTorch-style init: U(-1/sqrt(fan_in), 1/sqrt(fan_in))."""
    dims = {
        "fc1": (4, 128), "fc2": (128, 64), "fc3": (64, 32),
        "action_head": (32, 6),
        "value_fc1": (32, 64), "value_fc2": (64, 32), "value_out": (32, 1),
    }
    params = {}
    keys = jax.random.split(key, 2 * len(dims))
    for i, (name, (fin, fout)) in enumerate(dims.items()):
        bound = 1.0 / (fin ** 0.5)
        w = jax.random.uniform(keys[2 * i], (fin, fout), jnp.float32, -bound, bound)
        b = jax.random.uniform(keys[2 * i + 1], (1, fout), jnp.float32, -bound, bound)
        params[name] = (w, b)
    for name, d in [("ln1", 128), ("ln2", 64), ("value_ln1", 64), ("value_ln2", 32)]:
        params[name] = (jnp.ones((1, d), jnp.float32), jnp.zeros((1, d), jnp.float32))
    return params


def pack_params(params):
    """Pack the 21 params into W1 (8,128) bf16, W_pack (6,128,128) bf16,
    B_pack (16,128) f32.  Runs once on the host, outside jit."""
    w1, b1 = params["fc1"]
    g1, be1 = params["ln1"]
    w2, b2 = params["fc2"]
    g2, be2 = params["ln2"]
    w3, b3 = params["fc3"]
    wa, ba = params["action_head"]
    wv1, bv1 = params["value_fc1"]
    gv1, bev1 = params["value_ln1"]
    wv2, bv2 = params["value_fc2"]
    gv2, bev2 = params["value_ln2"]
    wvo, bvo = params["value_out"]

    w1p = jnp.zeros((8, 128), jnp.float32).at[:4, :].set(w1).astype(jnp.bfloat16)

    wp = jnp.zeros((6, 128, 128), jnp.float32)
    wp = wp.at[_W_FC2, :128, :64].set(w2)
    wp = wp.at[_W_FC3, :64, :32].set(w3)
    wp = wp.at[_W_ACT, :32, :6].set(wa)
    wp = wp.at[_W_VFC1, :32, :64].set(wv1)
    wp = wp.at[_W_VFC2, :64, :32].set(wv2)
    wp = wp.at[_W_VOUT, :32, _VAL_LANE:_VAL_LANE + 1].set(wvo)  # value -> lane 6
    wp = wp.astype(jnp.bfloat16)

    bp = jnp.zeros((16, 128), jnp.float32)
    for row, v in [(_B1, b1), (_G1, g1), (_BE1, be1),
                   (_B2, b2), (_G2, g2), (_BE2, be2),
                   (_B3, b3), (_BA, ba),
                   (_BV1, bv1), (_GV1, gv1), (_BEV1, bev1),
                   (_BV2, bv2), (_GV2, gv2), (_BEV2, bev2)]:
        bp = bp.at[row:row + 1, :v.shape[-1]].set(v)
    bp = bp.at[_BVO:_BVO + 1, _VAL_LANE:_VAL_LANE + 1].set(bvo)
    return w1p, wp, bp


def simplernet_forward(x, w1_pack, w_pack, b_pack, *, block_rows=2048):
    B, F = x.shape
    # Present exactly 8 input columns to the kernel (only the first 4 are used;
    # W1 rows 4:8 are zero so any extra columns are ignored).  For wide feature
    # inputs this cuts the per-row input DMA to 32 B.
    if F == 8:
        x_in = x
    elif F > 8:
        x_in = x[:, :8]
    else:
        x_in = jnp.pad(x, ((0, 0), (0, 8 - F)))

    # Batch tile: large to amortize the ~0.35us grid-step overhead; multiple of
    # 8 (sublane aligned) unless it covers the whole batch.
    if block_rows >= B:
        TB = B
    else:
        TB = max(8, (block_rows // 8) * 8)
    grid = (pl.cdiv(B, TB),)

    out = pl.pallas_call(
        simplernet_kernel,
        out_shape=jax.ShapeDtypeStruct((B, 8), jnp.float32),
        grid=grid,
        in_specs=[
            pl.BlockSpec((TB, 8), lambda i: (i, 0)),            # batch tile (pipelined)
            pl.BlockSpec(w1_pack.shape, lambda i: (0, 0)),      # resident fc1 weight
            pl.BlockSpec(w_pack.shape, lambda i: (0, 0, 0)),    # resident weights (bf16)
            pl.BlockSpec(b_pack.shape, lambda i: (0, 0)),       # resident biases/LN (f32)
        ],
        out_specs=pl.BlockSpec((TB, 8), lambda i: (i, 0)),
        compiler_params=pltpu.CompilerParams(
            # "parallel" lets v7x shard grid steps across its 2 TensorCores
            # (no-op on v5e/v6e).  Scoped-VMEM limit raised for large TB on
            # v5e/v6e; re-derive against 64 MiB physical before pushing
            # block_rows past ~4-8K on v7x.
            dimension_semantics=("parallel",),
            vmem_limit_bytes=48 * 1024 * 1024,
        ),
    )(x_in, w1_pack, w_pack, b_pack)
    return out[:, :6], out[:, _VAL_LANE:_VAL_LANE + 1]


def simplernet_ref(x, params):
    """Pure-JAX f32 reference matching the PyTorch module."""
    def ln(h, g, b):
        mu = jnp.mean(h, axis=-1, keepdims=True)
        var = jnp.mean((h - mu) ** 2, axis=-1, keepdims=True)
        return (h - mu) * jax.lax.rsqrt(var + EPS) * g + b

    x = x[:, :4]
    h = jax.nn.relu(ln(x @ params["fc1"][0] + params["fc1"][1], *params["ln1"]))
    h = jax.nn.relu(ln(h @ params["fc2"][0] + params["fc2"][1], *params["ln2"]))
    h = jax.nn.relu(h @ params["fc3"][0] + params["fc3"][1])
    logits = h @ params["action_head"][0] + params["action_head"][1]
    v = jax.nn.relu(ln(h @ params["value_fc1"][0] + params["value_fc1"][1], *params["value_ln1"]))
    v = jax.nn.relu(ln(v @ params["value_fc2"][0] + params["value_fc2"][1], *params["value_ln2"]))
    val = v @ params["value_out"][0] + params["value_out"][1]
    return logits, val


if __name__ == "__main__":
    key = jax.random.PRNGKey(0)
    k_param, k_x = jax.random.split(key)
    params = init_params(k_param)
    w1_pack, w_pack, b_pack = pack_params(params)

    # Input with extra features beyond 4 to exercise the x[:, :4] slicing path.
    x = jax.random.normal(k_x, (8, 8), jnp.float32)

    fwd = jax.jit(lambda xx: simplernet_forward(xx, w1_pack, w_pack, b_pack))
    logits, value = fwd(x)
    jax.block_until_ready((logits, value))

    ref_logits, ref_value = simplernet_ref(x, params)
    assert logits.shape == (8, 6) and value.shape == (8, 1)
    # Kernel uses bf16 MXU operands with f32 accumulation; compare against the
    # pure-f32 reference at bf16-level tolerance.
    assert jnp.allclose(logits, ref_logits, atol=2e-2, rtol=2e-2), (
        jnp.max(jnp.abs(logits - ref_logits)))
    assert jnp.allclose(value, ref_value, atol=2e-2, rtol=2e-2), (
        jnp.max(jnp.abs(value - ref_value)))
    print("KERNEL_OK")
</pallas_src>

<mosaic_0001>
module attributes {stable_mosaic.version = 11 : i64} {
  func.func @simplernet_kernel(%arg0: i32, %arg1: memref<8x8xf32, #tpu.memory_space<vmem>>, %arg2: memref<8x128xbf16, #tpu.memory_space<vmem>>, %arg3: memref<6x128x128xbf16, #tpu.memory_space<vmem>>, %arg4: memref<16x128xf32, #tpu.memory_space<vmem>>, %arg5: memref<8x8xf32, #tpu.memory_space<vmem>>) attributes {dimension_semantics = [#tpu.dimension_semantics<parallel>], iteration_bounds = array<i64: 1>, scalar_prefetch = 0 : i64, scratch_operands = 0 : i64, tpu.core_type = #tpu.core_type<tc>, window_params = [{transform_indices = @transform_0, window_bounds = array<i64: 8, 8>}, {pipeline_mode = #tpu.pipeline_mode<synchronous>, transform_indices = @transform_1, window_bounds = array<i64: 8, 128>}, {pipeline_mode = #tpu.pipeline_mode<synchronous>, transform_indices = @transform_2, window_bounds = array<i64: 6, 128, 128>}, {pipeline_mode = #tpu.pipeline_mode<synchronous>, transform_indices = @transform_3, window_bounds = array<i64: 16, 128>}, {transform_indices = @transform_4, window_bounds = array<i64: 8, 8>}]} {
    %c0 = arith.constant 0 : index
    %c0_0 = arith.constant 0 : index
    %0 = vector.load %arg4[%c0, %c0_0] : memref<16x128xf32, #tpu.memory_space<vmem>>, vector<16x128xf32>
    %c0_1 = arith.constant 0 : index
    %c0_2 = arith.constant 0 : index
    %1 = vector.load %arg1[%c0_1, %c0_2] : memref<8x8xf32, #tpu.memory_space<vmem>>, vector<8x8xf32>
    %2 = arith.truncf %1 : vector<8x8xf32> to vector<8x8xbf16>
    %c0_3 = arith.constant 0 : index
    %c0_4 = arith.constant 0 : index
    %3 = vector.load %arg2[%c0_3, %c0_4] : memref<8x128xbf16, #tpu.memory_space<vmem>>, vector<8x128xbf16>
    %cst = arith.constant dense<0.000000e+00> : vector<8x128xf32>
    %4 = tpu.matmul %2, %3, %cst {dimension_numbers = #tpu.dot_dimension_numbers<[1], [0], [0], [1], [0, 0, 1, 1], [], []>} : vector<8x8xbf16>, vector<8x128xbf16>, vector<8x128xf32> -> vector<8x128xf32>
    %5 = vector.extract_strided_slice %0 {offsets = [0, 0], sizes = [1, 128], strides = [1, 1]} : vector<16x128xf32> to vector<1x128xf32>
    %6 = vector.broadcast %5 : vector<1x128xf32> to vector<8x128xf32>
    %7 = arith.addf %4, %6 : vector<8x128xf32>
    %8 = vector.extract_strided_slice %0 {offsets = [1, 0], sizes = [1, 128], strides = [1, 1]} : vector<16x128xf32> to vector<1x128xf32>
    %9 = vector.extract_strided_slice %0 {offsets = [2, 0], sizes = [1, 128], strides = [1, 1]} : vector<16x128xf32> to vector<1x128xf32>
    %cst_5 = arith.constant dense<0.000000e+00> : vector<8xf32>
    %10 = vector.multi_reduction <add>, %7, %cst_5 [1] : vector<8x128xf32> to vector<8xf32>
    %11 = vector.shape_cast %10 : vector<8xf32> to vector<8x1xf32>
    %cst_6 = arith.constant 7.812500e-03 : f32
    %12 = vector.broadcast %cst_6 : f32 to vector<8x1xf32>
    %13 = arith.mulf %11, %12 : vector<8x1xf32>
    %14 = arith.mulf %7, %7 : vector<8x128xf32>
    %cst_7 = arith.constant dense<0.000000e+00> : vector<8xf32>
    %15 = vector.multi_reduction <add>, %14, %cst_7 [1] : vector<8x128xf32> to vector<8xf32>
    %16 = vector.shape_cast %15 : vector<8xf32> to vector<8x1xf32>
    %cst_8 = arith.constant 7.812500e-03 : f32
    %17 = vector.broadcast %cst_8 : f32 to vector<8x1xf32>
    %18 = arith.mulf %16, %17 : vector<8x1xf32>
    %19 = arith.mulf %13, %13 : vector<8x1xf32>
    %20 = arith.subf %18, %19 : vector<8x1xf32>
    %cst_9 = arith.constant 0.000000e+00 : f32
    %21 = vector.broadcast %cst_9 : f32 to vector<8x1xf32>
    %22 = arith.maximumf %20, %21 : vector<8x1xf32>
    %cst_10 = arith.constant 9.99999974E-6 : f32
    %23 = vector.broadcast %cst_10 : f32 to vector<8x1xf32>
    %24 = arith.addf %22, %23 : vector<8x1xf32>
    %25 = math.rsqrt %24 : vector<8x1xf32>
    %26 = vector.broadcast %8 : vector<1x128xf32> to vector<8x128xf32>
    %27 = vector.broadcast %25 : vector<8x1xf32> to vector<8x128xf32>
    %28 = arith.mulf %26, %27 : vector<8x128xf32>
    %29 = arith.mulf %7, %28 : vector<8x128xf32>
    %30 = vector.broadcast %13 : vector<8x1xf32> to vector<8x128xf32>
    %31 = arith.mulf %30, %28 : vector<8x128xf32>
    %32 = vector.broadcast %9 : vector<1x128xf32> to vector<8x128xf32>
    %33 = arith.subf %32, %31 : vector<8x128xf32>
    %34 = arith.addf %29, %33 : vector<8x128xf32>
    %cst_11 = arith.constant 0.000000e+00 : f32
    %35 = vector.broadcast %cst_11 : f32 to vector<8x128xf32>
    %36 = arith.maximumf %34, %35 : vector<8x128xf32>
    %37 = arith.truncf %36 : vector<8x128xf32> to vector<8x128xbf16>
    %c0_12 = arith.constant 0 : index
    %c0_13 = arith.constant 0 : index
    %c0_14 = arith.constant 0 : index
    %38 = vector.load %arg3[%c0_12, %c0_13, %c0_14] : memref<6x128x128xbf16, #tpu.memory_space<vmem>>, vector<1x128x128xbf16>
    %39 = vector.shape_cast %38 : vector<1x128x128xbf16> to vector<128x128xbf16>
    %cst_15 = arith.constant dense<0.000000e+00> : vector<8x128xf32>
    %40 = tpu.matmul %37, %39, %cst_15 {dimension_numbers = #tpu.dot_dimension_numbers<[1], [0], [0], [1], [0, 0, 1, 1], [], []>} : vector<8x128xbf16>, vector<128x128xbf16>, vector<8x128xf32> -> vector<8x128xf32>
    %41 = vector.extract_strided_slice %0 {offsets = [3, 0], sizes = [1, 128], strides = [1, 1]} : vector<16x128xf32> to vector<1x128xf32>
    %42 = vector.broadcast %41 : vector<1x128xf32> to vector<8x128xf32>
    %43 = arith.addf %40, %42 : vector<8x128xf32>
    %44 = vector.extract_strided_slice %0 {offsets = [4, 0], sizes = [1, 128], strides = [1, 1]} : vector<16x128xf32> to vector<1x128xf32>
    %45 = vector.extract_strided_slice %0 {offsets = [5, 0], sizes = [1, 128], strides = [1, 1]} : vector<16x128xf32> to vector<1x128xf32>
    %cst_16 = arith.constant dense<0.000000e+00> : vector<8xf32>
    %46 = vector.multi_reduction <add>, %43, %cst_16 [1] : vector<8x128xf32> to vector<8xf32>
    %47 = vector.shape_cast %46 : vector<8xf32> to vector<8x1xf32>
    %cst_17 = arith.constant 1.562500e-02 : f32
    %48 = vector.broadcast %cst_17 : f32 to vector<8x1xf32>
    %49 = arith.mulf %47, %48 : vector<8x1xf32>
    %50 = arith.mulf %43, %43 : vector<8x128xf32>
    %cst_18 = arith.constant dense<0.000000e+00> : vector<8xf32>
    %51 = vector.multi_reduction <add>, %50, %cst_18 [1] : vector<8x128xf32> to vector<8xf32>
    %52 = vector.shape_cast %51 : vector<8xf32> to vector<8x1xf32>
    %cst_19 = arith.constant 1.562500e-02 : f32
    %53 = vector.broadcast %cst_19 : f32 to vector<8x1xf32>
    %54 = arith.mulf %52, %53 : vector<8x1xf32>
    %55 = arith.mulf %49, %49 : vector<8x1xf32>
    %56 = arith.subf %54, %55 : vector<8x1xf32>
    %cst_20 = arith.constant 0.000000e+00 : f32
    %57 = vector.broadcast %cst_20 : f32 to vector<8x1xf32>
    %58 = arith.maximumf %56, %57 : vector<8x1xf32>
    %cst_21 = arith.constant 9.99999974E-6 : f32
    %59 = vector.broadcast %cst_21 : f32 to vector<8x1xf32>
    %60 = arith.addf %58, %59 : vector<8x1xf32>
    %61 = math.rsqrt %60 : vector<8x1xf32>
    %62 = vector.broadcast %44 : vector<1x128xf32> to vector<8x128xf32>
    %63 = vector.broadcast %61 : vector<8x1xf32> to vector<8x128xf32>
    %64 = arith.mulf %62, %63 : vector<8x128xf32>
    %65 = arith.mulf %43, %64 : vector<8x128xf32>
    %66 = vector.broadcast %49 : vector<8x1xf32> to vector<8x128xf32>
    %67 = arith.mulf %66, %64 : vector<8x128xf32>
    %68 = vector.broadcast %45 : vector<1x128xf32> to vector<8x128xf32>
    %69 = arith.subf %68, %67 : vector<8x128xf32>
    %70 = arith.addf %65, %69 : vector<8x128xf32>
    %cst_22 = arith.constant 0.000000e+00 : f32
    %71 = vector.broadcast %cst_22 : f32 to vector<8x128xf32>
    %72 = arith.maximumf %70, %71 : vector<8x128xf32>
    %73 = arith.truncf %72 : vector<8x128xf32> to vector<8x128xbf16>
    %c1 = arith.constant 1 : index
    %c0_23 = arith.constant 0 : index
    %c0_24 = arith.constant 0 : index
    %74 = vector.load %arg3[%c1, %c0_23, %c0_24] : memref<6x128x128xbf16, #tpu.memory_space<vmem>>, vector<1x128x128xbf16>
    %75 = vector.shape_cast %74 : vector<1x128x128xbf16> to vector<128x128xbf16>
    %cst_25 = arith.constant dense<0.000000e+00> : vector<8x128xf32>
    %76 = tpu.matmul %73, %75, %cst_25 {dimension_numbers = #tpu.dot_dimension_numbers<[1], [0], [0], [1], [0, 0, 1, 1], [], []>} : vector<8x128xbf16>, vector<128x128xbf16>, vector<8x128xf32> -> vector<8x128xf32>
    %77 = vector.extract_strided_slice %0 {offsets = [6, 0], sizes = [1, 128], strides = [1, 1]} : vector<16x128xf32> to vector<1x128xf32>
    %78 = vector.broadcast %77 : vector<1x128xf32> to vector<8x128xf32>
    %79 = arith.addf %76, %78 : vector<8x128xf32>
    %cst_26 = arith.constant 0.000000e+00 : f32
    %80 = vector.broadcast %cst_26 : f32 to vector<8x128xf32>
    %81 = arith.maximumf %79, %80 : vector<8x128xf32>
    %82 = arith.truncf %81 : vector<8x128xf32> to vector<8x128xbf16>
    %c2 = arith.constant 2 : index
    %c0_27 = arith.constant 0 : index
    %c0_28 = arith.constant 0 : index
    %83 = vector.load %arg3[%c2, %c0_27, %c0_28] : memref<6x128x128xbf16, #tpu.memory_space<vmem>>, vector<1x128x128xbf16>
    %84 = vector.shape_cast %83 : vector<1x128x128xbf16> to vector<128x128xbf16>
    %cst_29 = arith.constant dense<0.000000e+00> : vector<8x128xf32>
    %85 = tpu.matmul %82, %84, %cst_29 {dimension_numbers = #tpu.dot_dimension_numbers<[1], [0], [0], [1], [0, 0, 1, 1], [], []>} : vector<8x128xbf16>, vector<128x128xbf16>, vector<8x128xf32> -> vector<8x128xf32>
    %86 = vector.extract_strided_slice %0 {offsets = [7, 0], sizes = [1, 128], strides = [1, 1]} : vector<16x128xf32> to vector<1x128xf32>
    %87 = vector.broadcast %86 : vector<1x128xf32> to vector<8x128xf32>
    %88 = arith.addf %85, %87 : vector<8x128xf32>
    %89 = arith.truncf %81 : vector<8x128xf32> to vector<8x128xbf16>
    %c3 = arith.constant 3 : index
    %c0_30 = arith.constant 0 : index
    %c0_31 = arith.constant 0 : index
    %90 = vector.load %arg3[%c3, %c0_30, %c0_31] : memref<6x128x128xbf16, #tpu.memory_space<vmem>>, vector<1x128x128xbf16>
    %91 = vector.shape_cast %90 : vector<1x128x128xbf16> to vector<128x128xbf16>
    %cst_32 = arith.constant dense<0.000000e+00> : vector<8x128xf32>
    %92 = tpu.matmul %89, %91, %cst_32 {dimension_numbers = #tpu.dot_dimension_numbers<[1], [0], [0], [1], [0, 0, 1, 1], [], []>} : vector<8x128xbf16>, vector<128x128xbf16>, vector<8x128xf32> -> vector<8x128xf32>
    %93 = vector.extract_strided_slice %0 {offsets = [8, 0], sizes = [1, 128], strides = [1, 1]} : vector<16x128xf32> to vector<1x128xf32>
    %94 = vector.broadcast %93 : vector<1x128xf32> to vector<8x128xf32>
    %95 = arith.addf %92, %94 : vector<8x128xf32>
    %96 = vector.extract_strided_slice %0 {offsets = [9, 0], sizes = [1, 128], strides = [1, 1]} : vector<16x128xf32> to vector<1x128xf32>
    %97 = vector.extract_strided_slice %0 {offsets = [10, 0], sizes = [1, 128], strides = [1, 1]} : vector<16x128xf32> to vector<1x128xf32>
    %cst_33 = arith.constant dense<0.000000e+00> : vector<8xf32>
    %98 = vector.multi_reduction <add>, %95, %cst_33 [1] : vector<8x128xf32> to vector<8xf32>
    %99 = vector.shape_cast %98 : vector<8xf32> to vector<8x1xf32>
    %cst_34 = arith.constant 1.562500e-02 : f32
    %100 = vector.broadcast %cst_34 : f32 to vector<8x1xf32>
    %101 = arith.mulf %99, %100 : vector<8x1xf32>
    %102 = arith.mulf %95, %95 : vector<8x128xf32>
    %cst_35 = arith.constant dense<0.000000e+00> : vector<8xf32>
    %103 = vector.multi_reduction <add>, %102, %cst_35 [1] : vector<8x128xf32> to vector<8xf32>
    %104 = vector.shape_cast %103 : vector<8xf32> to vector<8x1xf32>
    %cst_36 = arith.constant 1.562500e-02 : f32
    %105 = vector.broadcast %cst_36 : f32 to vector<8x1xf32>
    %106 = arith.mulf %104, %105 : vector<8x1xf32>
    %107 = arith.mulf %101, %101 : vector<8x1xf32>
    %108 = arith.subf %106, %107 : vector<8x1xf32>
    %cst_37 = arith.constant 0.000000e+00 : f32
    %109 = vector.broadcast %cst_37 : f32 to vector<8x1xf32>
    %110 = arith.maximumf %108, %109 : vector<8x1xf32>
    %cst_38 = arith.constant 9.99999974E-6 : f32
    %111 = vector.broadcast %cst_38 : f32 to vector<8x1xf32>
    %112 = arith.addf %110, %111 : vector<8x1xf32>
    %113 = math.rsqrt %112 : vector<8x1xf32>
    %114 = vector.broadcast %96 : vector<1x128xf32> to vector<8x128xf32>
    %115 = vector.broadcast %113 : vector<8x1xf32> to vector<8x128xf32>
    %116 = arith.mulf %114, %115 : vector<8x128xf32>
    %117 = arith.mulf %95, %116 : vector<8x128xf32>
    %118 = vector.broadcast %101 : vector<8x1xf32> to vector<8x128xf32>
    %119 = arith.mulf %118, %116 : vector<8x128xf32>
    %120 = vector.broadcast %97 : vector<1x128xf32> to vector<8x128xf32>
    %121 = arith.subf %120, %119 : vector<8x128xf32>
    %122 = arith.addf %117, %121 : vector<8x128xf32>
    %cst_39 = arith.constant 0.000000e+00 : f32
    %123 = vector.broadcast %cst_39 : f32 to vector<8x128xf32>
    %124 = arith.maximumf %122, %123 : vector<8x128xf32>
    %125 = arith.truncf %124 : vector<8x128xf32> to vector<8x128xbf16>
    %c4 = arith.constant 4 : index
    %c0_40 = arith.constant 0 : index
    %c0_41 = arith.constant 0 : index
    %126 = vector.load %arg3[%c4, %c0_40, %c0_41] : memref<6x128x128xbf16, #tpu.memory_space<vmem>>, vector<1x128x128xbf16>
    %127 = vector.shape_cast %126 : vector<1x128x128xbf16> to vector<128x128xbf16>
    %cst_42 = arith.constant dense<0.000000e+00> : vector<8x128xf32>
    %128 = tpu.matmul %125, %127, %cst_42 {dimension_numbers = #tpu.dot_dimension_numbers<[1], [0], [0], [1], [0, 0, 1, 1], [], []>} : vector<8x128xbf16>, vector<128x128xbf16>, vector<8x128xf32> -> vector<8x128xf32>
    %129 = vector.extract_strided_slice %0 {offsets = [11, 0], sizes = [1, 128], strides = [1, 1]} : vector<16x128xf32> to vector<1x128xf32>
    %130 = vector.broadcast %129 : vector<1x128xf32> to vector<8x128xf32>
    %131 = arith.addf %128, %130 : vector<8x128xf32>
    %132 = vector.extract_strided_slice %0 {offsets = [12, 0], sizes = [1, 128], strides = [1, 1]} : vector<16x128xf32> to vector<1x128xf32>
    %133 = vector.extract_strided_slice %0 {offsets = [13, 0], sizes = [1, 128], strides = [1, 1]} : vector<16x128xf32> to vector<1x128xf32>
    %cst_43 = arith.constant dense<0.000000e+00> : vector<8xf32>
    %134 = vector.multi_reduction <add>, %131, %cst_43 [1] : vector<8x128xf32> to vector<8xf32>
    %135 = vector.shape_cast %134 : vector<8xf32> to vector<8x1xf32>
    %cst_44 = arith.constant 3.125000e-02 : f32
    %136 = vector.broadcast %cst_44 : f32 to vector<8x1xf32>
    %137 = arith.mulf %135, %136 : vector<8x1xf32>
    %138 = arith.mulf %131, %131 : vector<8x128xf32>
    %cst_45 = arith.constant dense<0.000000e+00> : vector<8xf32>
    %139 = vector.multi_reduction <add>, %138, %cst_45 [1] : vector<8x128xf32> to vector<8xf32>
    %140 = vector.shape_cast %139 : vector<8xf32> to vector<8x1xf32>
    %cst_46 = arith.constant 3.125000e-02 : f32
    %141 = vector.broadcast %cst_46 : f32 to vector<8x1xf32>
    %142 = arith.mulf %140, %141 : vector<8x1xf32>
    %143 = arith.mulf %137, %137 : vector<8x1xf32>
    %144 = arith.subf %142, %143 : vector<8x1xf32>
    %cst_47 = arith.constant 0.000000e+00 : f32
    %145 = vector.broadcast %cst_47 : f32 to vector<8x1xf32>
    %146 = arith.maximumf %144, %145 : vector<8x1xf32>
    %cst_48 = arith.constant 9.99999974E-6 : f32
    %147 = vector.broadcast %cst_48 : f32 to vector<8x1xf32>
    %148 = arith.addf %146, %147 : vector<8x1xf32>
    %149 = math.rsqrt %148 : vector<8x1xf32>
    %150 = vector.broadcast %132 : vector<1x128xf32> to vector<8x128xf32>
    %151 = vector.broadcast %149 : vector<8x1xf32> to vector<8x128xf32>
    %152 = arith.mulf %150, %151 : vector<8x128xf32>
    %153 = arith.mulf %131, %152 : vector<8x128xf32>
    %154 = vector.broadcast %137 : vector<8x1xf32> to vector<8x128xf32>
    %155 = arith.mulf %154, %152 : vector<8x128xf32>
    %156 = vector.broadcast %133 : vector<1x128xf32> to vector<8x128xf32>
    %157 = arith.subf %156, %155 : vector<8x128xf32>
    %158 = arith.addf %153, %157 : vector<8x128xf32>
    %cst_49 = arith.constant 0.000000e+00 : f32
    %159 = vector.broadcast %cst_49 : f32 to vector<8x128xf32>
    %160 = arith.maximumf %158, %159 : vector<8x128xf32>
    %161 = arith.truncf %160 : vector<8x128xf32> to vector<8x128xbf16>
    %c5 = arith.constant 5 : index
    %c0_50 = arith.constant 0 : index
    %c0_51 = arith.constant 0 : index
    %162 = vector.load %arg3[%c5, %c0_50, %c0_51] : memref<6x128x128xbf16, #tpu.memory_space<vmem>>, vector<1x128x128xbf16>
    %163 = vector.shape_cast %162 : vector<1x128x128xbf16> to vector<128x128xbf16>
    %cst_52 = arith.constant dense<0.000000e+00> : vector<8x128xf32>
    %164 = tpu.matmul %161, %163, %cst_52 {dimension_numbers = #tpu.dot_dimension_numbers<[1], [0], [0], [1], [0, 0, 1, 1], [], []>} : vector<8x128xbf16>, vector<128x128xbf16>, vector<8x128xf32> -> vector<8x128xf32>
    %165 = vector.extract_strided_slice %0 {offsets = [14, 0], sizes = [1, 128], strides = [1, 1]} : vector<16x128xf32> to vector<1x128xf32>
    %166 = vector.broadcast %165 : vector<1x128xf32> to vector<8x128xf32>
    %167 = arith.addf %164, %166 : vector<8x128xf32>
    %168 = arith.addf %88, %167 : vector<8x128xf32>
    %169 = vector.extract_strided_slice %168 {offsets = [0, 0], sizes = [8, 8], strides = [1, 1]} : vector<8x128xf32> to vector<8x8xf32>
    %c0_53 = arith.constant 0 : index
    %c0_54 = arith.constant 0 : index
    %170 = vector.load %arg5[%c0_53, %c0_54] : memref<8x8xf32, #tpu.memory_space<vmem>>, vector<8x8xf32>
    tpu.vector_store %arg5[%c0_53, %c0_54], %169 {strides = array<i32>} : memref<8x8xf32, #tpu.memory_space<vmem>>, vector<8x8xf32>,
    return
  }
  func.func @transform_0(%arg0: i32) -> (i32, i32) {
    %c0_i32 = arith.constant 0 : i32
    %c0_i32_0 = arith.constant 0 : i32
    return %arg0, %c0_i32 : i32, i32
  }
  func.func @transform_1(%arg0: i32) -> (i32, i32) {
    %c0_i32 = arith.constant 0 : i32
    %c0_i32_0 = arith.constant 0 : i32
    %c0_i32_1 = arith.constant 0 : i32
    return %c0_i32, %c0_i32_0 : i32, i32
  }
  func.func @transform_2(%arg0: i32) -> (i32, i32, i32) {
    %c0_i32 = arith.constant 0 : i32
    %c0_i32_0 = arith.constant 0 : i32
    %c0_i32_1 = arith.constant 0 : i32
    %c0_i32_2 = arith.constant 0 : i32
    return %c0_i32, %c0_i32_0, %c0_i32_1 : i32, i32, i32
  }
  func.func @transform_3(%arg0: i32) -> (i32, i32) {
    %c0_i32 = arith.constant 0 : i32
    %c0_i32_0 = arith.constant 0 : i32
    %c0_i32_1 = arith.constant 0 : i32
    return %c0_i32, %c0_i32_0 : i32, i32
  }
  func.func @transform_4(%arg0: i32) -> (i32, i32) {
    %c0_i32 = arith.constant 0 : i32
    %c0_i32_0 = arith.constant 0 : i32
    return %arg0, %c0_i32 : i32, i32
  }
}

</mosaic_0001>

<llo_original>
// kernel: _lambda_.1
$region0: #{_lambda_.1}
  #allocation0 [shape = 'u32[]', space=smem, size = 0x4, offset = 0x4, fixed_abs, tag = 'smem constant byte address 0x4 - core index']
  #allocation1 [shape = 'u32[144,128]{1,0:T(1,128)}', space=vmem, size = 0x12000, scoped, tag = 'internal scratch']
  %s0 = inlined_call_operand.hbm [shape: f32[8,8], index: 0, kind: input, shape index: {}]
  %s1 = inlined_call_operand.vmem [shape: bf16[8,128], index: 1, kind: input, shape index: {}]
  %s2 = inlined_call_operand.hbm [shape: bf16[6,128,128], index: 2, kind: input, shape index: {}]
  %s3 = inlined_call_operand.hbm [shape: f32[16,128], index: 3, kind: input, shape index: {}]
  %s4 = inlined_call_operand.vmem [shape: f32[8,8], index: 4, kind: output, shape index: {}]
  %s5 = sld [smem:[#allocation0]]
  $region38: #{_lambda_.1} parent=0
    _
  %s7 = ssub.s32 1, %s5
  %s8 = scalar_select 0, %s7, %s5
  $region1: #{_lambda_.1} parent=0
    #allocation2 [shape = 'u8[4096]{0}', space=vmem, size = 0x1000, scoped, tag = 'input window, operand 0, single buffered']
    #allocation3 [shape = 's32[1]{0}', space=sflag, size = 0x4, scoped, tag = 'scoped memory for _lambda_.1']
    #allocation4 [shape = 'u8[196608]{0}', space=vmem, size = 0x30000, scoped, tag = 'input window, operand 2, single buffered']
    #allocation5 [shape = 's32[1]{0}', space=sflag, size = 0x4, scoped, tag = 'scoped memory for _lambda_.1']
    #allocation6 [shape = 'u8[8192]{0}', space=vmem, size = 0x2000, scoped, tag = 'input window, operand 3, single buffered']
    %9 = vsyncpa [#allocation3], 0
    %10 = vsyncpa [#allocation5], 0
    // Predicated region
    $region2: #{_lambda_.1} parent=1 // pred_check
      _
    $region3: #{_lambda_.1} parent=1 // pred_check_branch
      %12 = sbr.rel (0) target = $region5
    $region4: #{_lambda_.1} parent=1 // pred_region
      %s14 = ssub.s32 128, 128
      %15 = vsyncadd [#allocation3], %s14
      %s17 = sshll.u32 [#allocation2], 4
      %s18 = int_to_ptr.vmem [resolvable:$true] %s17
      %20 = dma.hbm_to_vmem [thread:$0]  %s0, 128, %s18, [#allocation3]
    $region5: #{_lambda_.1} parent=1 // pred_fallthru
      _
    // Predicated region
    $region6: #{_lambda_.1} parent=1 // pred_check
      _
    $region7: #{_lambda_.1} parent=1 // pred_check_branch
      %22 = sbr.rel (0) target = $region9
    $region8: #{_lambda_.1} parent=1 // pred_region
      _
    $region9: #{_lambda_.1} parent=1 // pred_fallthru
      _
    // Predicated region
    $region10: #{_lambda_.1} parent=1 // pred_check
      _
    $region11: #{_lambda_.1} parent=1 // pred_check_branch
      %24 = sbr.rel (0) target = $region13
    $region12: #{_lambda_.1} parent=1 // pred_region
      %s26 = ssub.s32 6144, 6144
      %27 = vsyncadd [#allocation5], %s26
      %s28 = sshll.u32 [#allocation4], 4
      %s29 = int_to_ptr.vmem [resolvable:$true] %s28
      %34 = dma.hbm_to_vmem [thread:$0]  %s2, 6144, %s29, [#allocation5], 64, 64, 4
    $region13: #{_lambda_.1} parent=1 // pred_fallthru
      _
    // Predicated region
    $region14: #{_lambda_.1} parent=1 // pred_check
      _
    $region15: #{_lambda_.1} parent=1 // pred_check_branch
      %36 = sbr.rel (0) target = $region17
    $region16: #{_lambda_.1} parent=1 // pred_region
      %s38 = ssub.s32 256, 256
      %39 = vsyncadd [#allocation5], %s38
      %s40 = sshll.u32 [#allocation6], 4
      %s41 = int_to_ptr.vmem [resolvable:$true] %s40
      %46 = dma.hbm_to_vmem [thread:$0]  %s3, 256, %s41, [#allocation5], 128, 128, 8
    $region17: #{_lambda_.1} parent=1 // pred_fallthru
      _
    // Predicated region
    $region18: #{_lambda_.1} parent=1 // pred_check
      _
    $region19: #{_lambda_.1} parent=1 // pred_check_branch
      %48 = sbr.rel (0) target = $region21
    $region20: #{_lambda_.1} parent=1 // pred_region
      %49 = dma.done [#allocation3], 128
    $region21: #{_lambda_.1} parent=1 // pred_fallthru
      _
    // Predicated region
    $region22: #{_lambda_.1} parent=1 // pred_check
      _
    $region23: #{_lambda_.1} parent=1 // pred_check_branch
      %51 = sbr.rel (0) target = $region25
    $region24: #{_lambda_.1} parent=1 // pred_region
      %52 = dma.done [#allocation5], 6144
    $region25: #{_lambda_.1} parent=1 // pred_fallthru
      _
    // Predicated region
    $region26: #{_lambda_.1} parent=1 // pred_check
      _
    $region27: #{_lambda_.1} parent=1 // pred_check_branch
      %54 = sbr.rel (0) target = $region29
    $region28: #{_lambda_.1} parent=1 // pred_region
      %55 = dma.done [#allocation5], 256
    $region29: #{_lambda_.1} parent=1 // pred_fallthru
      _
    %v57 = vld [vmem:[#allocation6] sm:$0xff]
    %v58 = vld [vmem:[#allocation6 + $0x8] sm:$0xff]
    %v59 = vld [vmem:[#allocation2] sm:$0xff]
    %v60 = vpack.c.bf16 %v59, %v59
    %v61 = vld [vmem:[%s1] sm:$0xf]
    %v62 = vlaneseq
    %v63 = vshrl.u32 %v62, 7
    %v64 = vsub.s32 0, %v63
    %v65 = vrot.slane %v57, %v64
    %vm66 = vcmask 64512
    %v68 = vsel %vm66, %v60, 0
    %vm70 = vcmask 1043456
    %v72 = vsel %vm70, %v61, 0
    %74 = vmatprep.subr.bf16.mxu0 0
    %75 = vmatpush1.bf16.msra.mxu0 %v72
    %76 = vmatprep.subr.bf16.mxu0 0
    %77 = vmatpush1.bf16.msra.mxu0 0
    %78 = vmatprep.subr.bf16.mxu0 0
    %79 = vmatpush1.bf16.msra.mxu0 0
    %80 = vmatprep.subr.bf16.mxu0 0
    %81 = vmatpush1.bf16.msra.mxu0 0
    %82 = vmatprep.subr.bf16.mxu0 0
    %83 = vmatpush1.bf16.msra.mxu0 0
    %84 = vmatprep.subr.bf16.mxu0 0
    %85 = vmatpush1.bf16.msra.mxu0 0
    %86 = vmatprep.subr.bf16.mxu0 0
    %87 = vmatpush1.bf16.msra.mxu0 0
    %88 = vmatprep.subr.bf16.mxu0 0
    %89 = vmatpush1.bf16.msra.mxu0 0
    %90 = vmatprep.subr.bf16.mxu0 0
    %91 = vmatpush1.bf16.msra.mxu0 0
    %92 = vmatprep.subr.bf16.mxu0 0
    %93 = vmatpush1.bf16.msra.mxu0 0
    %94 = vmatprep.subr.bf16.mxu0 0
    %95 = vmatpush1.bf16.msra.mxu0 0
    %96 = vmatprep.subr.bf16.mxu0 0
    %97 = vmatpush1.bf16.msra.mxu0 0
    %98 = vmatprep.subr.bf16.mxu0 0
    %99 = vmatpush1.bf16.msra.mxu0 0
    %100 = vmatprep.subr.bf16.mxu0 0
    %101 = vmatpush1.bf16.msra.mxu0 0
    %102 = vmatprep.subr.bf16.mxu0 0
    %103 = vmatpush1.bf16.msra.mxu0 0
    %104 = vmatprep.subr.bf16.mxu0 0
    %105 = vmatpush1.bf16.msra.mxu0 0
    %106 = vmatprep.mubr.bf16.mxu0 0
    %107 = vmatmul.mubr.bf16.gmra.mrb[0].mxu0 %v68
    %v108 = vpop.f32.mrb[0].mxu0
    %v109 = vadd.f32 %v65, %v108
    %v110 = vpop.f32.mrb[0].mxu0
    %v111 = vpop.f32.mrb[0].mxu0
    %v112 = vpop.f32.mrb[0].mxu0
    %113 = vdwg.mxu0
    %114 = vadd.xlane.f32.xlu0 %v109
    %v115 = vpop.xlane.xlu0 %114
    %v116 = vmul.f32 %v115, 0.0078125
    %v117 = vmul.f32 %v109, %v109
    %118 = vadd.xlane.f32.xlu0 %v117
    %v119 = vpop.xlane.xlu0 %118
    %v120 = vmul.f32 %v119, 0.0078125
    %v121 = vmul.f32 %v116, %v116
    %v122 = vsub.f32 %v120, %v121
    %v123 = vmax.f32 %v122, 0.0
    %v124 = vadd.f32 %v123, 1e-05
    %v125 = vrsqrt.pop %v124
    %v126 = vlaneseq
    %v127 = vshrl.u32 %v126, 7
    %v128 = vsub.s32 1, %v127
    %v129 = vrot.slane %v57, %v128
    %v130 = vmul.f32 %v129, %v125
    %v131 = vmul.f32 %v109, %v130
    %v132 = vmul.f32 %v116, %v130
    %v133 = vlaneseq
    %v134 = vshrl.u32 %v133, 7
    %v135 = vsub.s32 2, %v134
    %v136 = vrot.slane %v57, %v135
    %v137 = vsub.f32 %v136, %v132
    %v138 = vadd.f32 %v131, %v137
    %v139 = vmax.f32 %v138, 0.0
    %v140 = vpack.c.bf16 %v139, %v139
    %v141 = vld [vmem:[#allocation4] sm:$0xf]
    %v142 = vld [vmem:[#allocation4 + $0x4] sm:$0xf]
    %v143 = vld [vmem:[#allocation4 + $0x8] sm:$0xf]
    %v144 = vld [vmem:[#allocation4 + $0xc] sm:$0xf]
    %v145 = vld [vmem:[#allocation4 + $0x10] sm:$0xf]
    %v146 = vld [vmem:[#allocation4 + $0x14] sm:$0xf]
    %v147 = vld [vmem:[#allocation4 + $0x18] sm:$0xf]
    %v148 = vld [vmem:[#allocation4 + $0x1c] sm:$0xf]
    %v149 = vld [vmem:[#allocation4 + $0x20] sm:$0xf]
    %v150 = vld [vmem:[#allocation4 + $0x24] sm:$0xf]
    %v151 = vld [vmem:[#allocation4 + $0x28] sm:$0xf]
    %v152 = vld [vmem:[#allocation4 + $0x2c] sm:$0xf]
    %v153 = vld [vmem:[#allocation4 + $0x30] sm:$0xf]
    %v154 = vld [vmem:[#allocation4 + $0x34] sm:$0xf]
    %v155 = vld [vmem:[#allocation4 + $0x38] sm:$0xf]
    %v156 = vld [vmem:[#allocation4 + $0x3c] sm:$0xf]
    %v157 = vlaneseq
    %v158 = vshrl.u32 %v157, 7
    %v159 = vsub.s32 3, %v158
    %v160 = vrot.slane %v57, %v159
    %v177 = vunpack.c.l.b16 %v141
    %v178 = vunpack.c.l.b16 %v142
    %v179 = vunpack.c.l.b16 %v143
    %v180 = vunpack.c.l.b16 %v144
    %v181 = vunpack.c.l.b16 %v145
    %v182 = vunpack.c.l.b16 %v146
    %v183 = vunpack.c.l.b16 %v147
    %v184 = vunpack.c.l.b16 %v148
    %v185 = vunpack.c.l.b16 %v149
    %v186 = vunpack.c.l.b16 %v150
    %v187 = vunpack.c.l.b16 %v151
    %v188 = vunpack.c.l.b16 %v152
    %v189 = vunpack.c.l.b16 %v153
    %v190 = vunpack.c.l.b16 %v154
    %v191 = vunpack.c.l.b16 %v155
    %v192 = vunpack.c.l.b16 %v156
    %v193 = vpack.c.b16 %v178, %v177
    %v194 = vpack.c.b16 %v180, %v179
    %v195 = vpack.c.b16 %v182, %v181
    %v196 = vpack.c.b16 %v184, %v183
    %v197 = vpack.c.b16 %v186, %v185
    %v198 = vpack.c.b16 %v188, %v187
    %v199 = vpack.c.b16 %v190, %v189
    %v200 = vpack.c.b16 %v192, %v191
    %209 = vmatprep.subr.bf16.mxu0 0
    %210 = vmatpush1.bf16.msra.mxu0 %v193
    %211 = vmatprep.subr.bf16.mxu0 0
    %212 = vmatpush1.bf16.msra.mxu0 %v194
    %213 = vmatprep.subr.bf16.mxu0 0
    %214 = vmatpush1.bf16.msra.mxu0 %v195
    %215 = vmatprep.subr.bf16.mxu0 0
    %216 = vmatpush1.bf16.msra.mxu0 %v196
    %217 = vmatprep.subr.bf16.mxu0 0
    %218 = vmatpush1.bf16.msra.mxu0 %v197
    %219 = vmatprep.subr.bf16.mxu0 0
    %220 = vmatpush1.bf16.msra.mxu0 %v198
    %221 = vmatprep.subr.bf16.mxu0 0
    %222 = vmatpush1.bf16.msra.mxu0 %v199
    %223 = vmatprep.subr.bf16.mxu0 0
    %224 = vmatpush1.bf16.msra.mxu0 %v200
    %225 = vmatprep.subr.bf16.mxu0 0
    %226 = vmatpush1.bf16.msra.mxu0 0
    %227 = vmatprep.subr.bf16.mxu0 0
    %228 = vmatpush1.bf16.msra.mxu0 0
    %229 = vmatprep.subr.bf16.mxu0 0
    %230 = vmatpush1.bf16.msra.mxu0 0
    %231 = vmatprep.subr.bf16.mxu0 0
    %232 = vmatpush1.bf16.msra.mxu0 0
    %233 = vmatprep.subr.bf16.mxu0 0
    %234 = vmatpush1.bf16.msra.mxu0 0
    %235 = vmatprep.subr.bf16.mxu0 0
    %236 = vmatpush1.bf16.msra.mxu0 0
    %237 = vmatprep.subr.bf16.mxu0 0
    %238 = vmatpush1.bf16.msra.mxu0 0
    %239 = vmatprep.subr.bf16.mxu0 0
    %240 = vmatpush1.bf16.msra.mxu0 0
    %241 = vmatprep.mubr.bf16.mxu0 0
    %242 = vmatmul.mubr.bf16.gmra.mrb[0].mxu0 %v140
    %v243 = vpop.f32.mrb[0].mxu0
    %v244 = vadd.f32 %v160, %v243
    %v245 = vpop.f32.mrb[0].mxu0
    %v246 = vpop.f32.mrb[0].mxu0
    %v247 = vpop.f32.mrb[0].mxu0
    %248 = vdwg.mxu0
    %249 = vadd.xlane.f32.xlu0 %v244
    %v250 = vpop.xlane.xlu0 %249
    %v251 = vmul.f32 %v250, 0.015625
    %v252 = vmul.f32 %v244, %v244
    %253 = vadd.xlane.f32.xlu0 %v252
    %v254 = vpop.xlane.xlu0 %253
    %v255 = vmul.f32 %v254, 0.015625
    %v256 = vmul.f32 %v251, %v251
    %v257 = vsub.f32 %v255, %v256
    %v258 = vmax.f32 %v257, 0.0
    %v259 = vadd.f32 %v258, 1e-05
    %v260 = vrsqrt.pop %v259
    %v261 = vlaneseq
    %v262 = vshrl.u32 %v261, 7
    %v263 = vsub.s32 4, %v262
    %v264 = vrot.slane %v57, %v263
    %v265 = vmul.f32 %v264, %v260
    %v266 = vmul.f32 %v244, %v265
    %v267 = vmul.f32 %v251, %v265
    %v268 = vlaneseq
    %v269 = vshrl.u32 %v268, 7
    %v270 = vsub.s32 5, %v269
    %v271 = vrot.slane %v57, %v270
    %v272 = vsub.f32 %v271, %v267
    %v273 = vadd.f32 %v266, %v272
    %v274 = vmax.f32 %v273, 0.0
    %v275 = vpack.c.bf16 %v274, %v274
    %s276 = scalar_lea.vmem [#allocation4], 64
    %v277 = vld [vmem:[%s276] sm:$0xf]
    %v278 = vld [vmem:[%s276 + $0x4] sm:$0xf]
    %v279 = vld [vmem:[%s276 + $0x8] sm:$0xf]
    %v280 = vld [vmem:[%s276 + $0xc] sm:$0xf]
    %v281 = vld [vmem:[%s276 + $0x10] sm:$0xf]
    %v282 = vld [vmem:[%s276 + $0x14] sm:$0xf]
    %v283 = vld [vmem:[%s276 + $0x18] sm:$0xf]
    %v284 = vld [vmem:[%s276 + $0x1c] sm:$0xf]
    %v285 = vld [vmem:[%s276 + $0x20] sm:$0xf]
    %v286 = vld [vmem:[%s276 + $0x24] sm:$0xf]
    %v287 = vld [vmem:[%s276 + $0x28] sm:$0xf]
    %v288 = vld [vmem:[%s276 + $0x2c] sm:$0xf]
    %v289 = vld [vmem:[%s276 + $0x30] sm:$0xf]
    %v290 = vld [vmem:[%s276 + $0x34] sm:$0xf]
    %v291 = vld [vmem:[%s276 + $0x38] sm:$0xf]
    %v292 = vld [vmem:[%s276 + $0x3c] sm:$0xf]
    %v293 = vlaneseq
    %v294 = vshrl.u32 %v293, 7
    %v295 = vsub.s32 6, %v294
    %v296 = vrot.slane %v57, %v295
    %v313 = vunpack.c.l.b16 %v277
    %v314 = vunpack.c.l.b16 %v278
    %v315 = vunpack.c.l.b16 %v279
    %v316 = vunpack.c.l.b16 %v280
    %v317 = vunpack.c.l.b16 %v281
    %v318 = vunpack.c.l.b16 %v282
    %v319 = vunpack.c.l.b16 %v283
    %v320 = vunpack.c.l.b16 %v284
    %v321 = vunpack.c.l.b16 %v285
    %v322 = vunpack.c.l.b16 %v286
    %v323 = vunpack.c.l.b16 %v287
    %v324 = vunpack.c.l.b16 %v288
    %v325 = vunpack.c.l.b16 %v289
    %v326 = vunpack.c.l.b16 %v290
    %v327 = vunpack.c.l.b16 %v291
    %v328 = vunpack.c.l.b16 %v292
    %v329 = vpack.c.b16 %v314, %v313
    %v330 = vpack.c.b16 %v316, %v315
    %v331 = vpack.c.b16 %v318, %v317
    %v332 = vpack.c.b16 %v320, %v319
    %v333 = vpack.c.b16 %v322, %v321
    %v334 = vpack.c.b16 %v324, %v323
    %v335 = vpack.c.b16 %v326, %v325
    %v336 = vpack.c.b16 %v328, %v327
    %345 = vmatprep.subr.bf16.mxu0 0
    %346 = vmatpush1.bf16.msra.mxu0 %v329
    %347 = vmatprep.subr.bf16.mxu0 0
    %348 = vmatpush1.bf16.msra.mxu0 %v330
    %349 = vmatprep.subr.bf16.mxu0 0
    %350 = vmatpush1.bf16.msra.mxu0 %v331
    %351 = vmatprep.subr.bf16.mxu0 0
    %352 = vmatpush1.bf16.msra.mxu0 %v332
    %353 = vmatprep.subr.bf16.mxu0 0
    %354 = vmatpush1.bf16.msra.mxu0 %v333
    %355 = vmatprep.subr.bf16.mxu0 0
    %356 = vmatpush1.bf16.msra.mxu0 %v334
    %357 = vmatprep.subr.bf16.mxu0 0
    %358 = vmatpush1.bf16.msra.mxu0 %v335
    %359 = vmatprep.subr.bf16.mxu0 0
    %360 = vmatpush1.bf16.msra.mxu0 %v336
    %361 = vmatprep.subr.bf16.mxu0 0
    %362 = vmatpush1.bf16.msra.mxu0 0
    %363 = vmatprep.subr.bf16.mxu0 0
    %364 = vmatpush1.bf16.msra.mxu0 0
    %365 = vmatprep.subr.bf16.mxu0 0
    %366 = vmatpush1.bf16.msra.mxu0 0
    %367 = vmatprep.subr.bf16.mxu0 0
    %368 = vmatpush1.bf16.msra.mxu0 0
    %369 = vmatprep.subr.bf16.mxu0 0
    %370 = vmatpush1.bf16.msra.mxu0 0
    %371 = vmatprep.subr.bf16.mxu0 0
    %372 = vmatpush1.bf16.msra.mxu0 0
    %373 = vmatprep.subr.bf16.mxu0 0
    %374 = vmatpush1.bf16.msra.mxu0 0
    %375 = vmatprep.subr.bf16.mxu0 0
    %376 = vmatpush1.bf16.msra.mxu0 0
    %377 = vmatprep.mubr.bf16.mxu0 0
    %378 = vmatmul.mubr.bf16.gmra.mrb[0].mxu0 %v275
    %v379 = vpop.f32.mrb[0].mxu0
    %v380 = vadd.f32 %v296, %v379
    %v381 = vpop.f32.mrb[0].mxu0
    %v382 = vpop.f32.mrb[0].mxu0
    %v383 = vpop.f32.mrb[0].mxu0
    %384 = vdwg.mxu0
    %v385 = vmax.f32 %v380, 0.0
    %v386 = vpack.c.bf16 %v385, %v385
    %s387 = scalar_lea.vmem [#allocation4], 128
    %v388 = vld [vmem:[%s387] sm:$0xf]
    %v389 = vld [vmem:[%s387 + $0x4] sm:$0xf]
    %v390 = vld [vmem:[%s387 + $0x8] sm:$0xf]
    %v391 = vld [vmem:[%s387 + $0xc] sm:$0xf]
    %v392 = vld [vmem:[%s387 + $0x10] sm:$0xf]
    %v393 = vld [vmem:[%s387 + $0x14] sm:$0xf]
    %v394 = vld [vmem:[%s387 + $0x18] sm:$0xf]
    %v395 = vld [vmem:[%s387 + $0x1c] sm:$0xf]
    %v396 = vld [vmem:[%s387 + $0x20] sm:$0xf]
    %v397 = vld [vmem:[%s387 + $0x24] sm:$0xf]
    %v398 = vld [vmem:[%s387 + $0x28] sm:$0xf]
    %v399 = vld [vmem:[%s387 + $0x2c] sm:$0xf]
    %v400 = vld [vmem:[%s387 + $0x30] sm:$0xf]
    %v401 = vld [vmem:[%s387 + $0x34] sm:$0xf]
    %v402 = vld [vmem:[%s387 + $0x38] sm:$0xf]
    %v403 = vld [vmem:[%s387 + $0x3c] sm:$0xf]
    %v404 = vlaneseq
    %v405 = vshrl.u32 %v404, 7
    %v406 = vsub.s32 7, %v405
    %v407 = vrot.slane %v57, %v406
    %v424 = vunpack.c.l.b16 %v388
    %v425 = vunpack.c.l.b16 %v389
    %v426 = vunpack.c.l.b16 %v390
    %v427 = vunpack.c.l.b16 %v391
    %v428 = vunpack.c.l.b16 %v392
    %v429 = vunpack.c.l.b16 %v393
    %v430 = vunpack.c.l.b16 %v394
    %v431 = vunpack.c.l.b16 %v395
    %v432 = vunpack.c.l.b16 %v396
    %v433 = vunpack.c.l.b16 %v397
    %v434 = vunpack.c.l.b16 %v398
    %v435 = vunpack.c.l.b16 %v399
    %v436 = vunpack.c.l.b16 %v400
    %v437 = vunpack.c.l.b16 %v401
    %v438 = vunpack.c.l.b16 %v402
    %v439 = vunpack.c.l.b16 %v403
    %v440 = vpack.c.b16 %v425, %v424
    %v441 = vpack.c.b16 %v427, %v426
    %v442 = vpack.c.b16 %v429, %v428
    %v443 = vpack.c.b16 %v431, %v430
    %v444 = vpack.c.b16 %v433, %v432
    %v445 = vpack.c.b16 %v435, %v434
    %v446 = vpack.c.b16 %v437, %v436
    %v447 = vpack.c.b16 %v439, %v438
    %456 = vmatprep.subr.bf16.mxu0 0
    %457 = vmatpush1.bf16.msra.mxu0 %v440
    %458 = vmatprep.subr.bf16.mxu0 0
    %459 = vmatpush1.bf16.msra.mxu0 %v441
    %460 = vmatprep.subr.bf16.mxu0 0
    %461 = vmatpush1.bf16.msra.mxu0 %v442
    %462 = vmatprep.subr.bf16.mxu0 0
    %463 = vmatpush1.bf16.msra.mxu0 %v443
    %464 = vmatprep.subr.bf16.mxu0 0
    %465 = vmatpush1.bf16.msra.mxu0 %v444
    %466 = vmatprep.subr.bf16.mxu0 0
    %467 = vmatpush1.bf16.msra.mxu0 %v445
    %468 = vmatprep.subr.bf16.mxu0 0
    %469 = vmatpush1.bf16.msra.mxu0 %v446
    %470 = vmatprep.subr.bf16.mxu0 0
    %471 = vmatpush1.bf16.msra.mxu0 %v447
    %472 = vmatprep.subr.bf16.mxu0 0
    %473 = vmatpush1.bf16.msra.mxu0 0
    %474 = vmatprep.subr.bf16.mxu0 0
    %475 = vmatpush1.bf16.msra.mxu0 0
    %476 = vmatprep.subr.bf16.mxu0 0
    %477 = vmatpush1.bf16.msra.mxu0 0
    %478 = vmatprep.subr.bf16.mxu0 0
    %479 = vmatpush1.bf16.msra.mxu0 0
    %480 = vmatprep.subr.bf16.mxu0 0
    %481 = vmatpush1.bf16.msra.mxu0 0
    %482 = vmatprep.subr.bf16.mxu0 0
    %483 = vmatpush1.bf16.msra.mxu0 0
    %484 = vmatprep.subr.bf16.mxu0 0
    %485 = vmatpush1.bf16.msra.mxu0 0
    %486 = vmatprep.subr.bf16.mxu0 0
    %487 = vmatpush1.bf16.msra.mxu0 0
    %488 = vmatprep.mubr.bf16.mxu0 0
    %489 = vmatmul.mubr.bf16.gmra.mrb[0].mxu0 %v386
    %v490 = vpop.f32.mrb[0].mxu0
    %v491 = vadd.f32 %v407, %v490
    %v492 = vpop.f32.mrb[0].mxu0
    %v493 = vpop.f32.mrb[0].mxu0
    %v494 = vpop.f32.mrb[0].mxu0
    %495 = vdwg.mxu0
    %s496 = scalar_lea.vmem [#allocation4], 192
    %v497 = vld [vmem:[%s496] sm:$0xf]
    %v498 = vld [vmem:[%s496 + $0x4] sm:$0xf]
    %v499 = vld [vmem:[%s496 + $0x8] sm:$0xf]
    %v500 = vld [vmem:[%s496 + $0xc] sm:$0xf]
    %v501 = vld [vmem:[%s496 + $0x10] sm:$0xf]
    %v502 = vld [vmem:[%s496 + $0x14] sm:$0xf]
    %v503 = vld [vmem:[%s496 + $0x18] sm:$0xf]
    %v504 = vld [vmem:[%s496 + $0x1c] sm:$0xf]
    %v505 = vld [vmem:[%s496 + $0x20] sm:$0xf]
    %v506 = vld [vmem:[%s496 + $0x24] sm:$0xf]
    %v507 = vld [vmem:[%s496 + $0x28] sm:$0xf]
    %v508 = vld [vmem:[%s496 + $0x2c] sm:$0xf]
    %v509 = vld [vmem:[%s496 + $0x30] sm:$0xf]
    %v510 = vld [vmem:[%s496 + $0x34] sm:$0xf]
    %v511 = vld [vmem:[%s496 + $0x38] sm:$0xf]
    %v512 = vld [vmem:[%s496 + $0x3c] sm:$0xf]
    %v513 = vlaneseq
    %v514 = vshrl.u32 %v513, 7
    %v515 = vsub.s32 0, %v514
    %v516 = vrot.slane %v58, %v515
    %v533 = vunpack.c.l.b16 %v497
    %v534 = vunpack.c.l.b16 %v498
    %v535 = vunpack.c.l.b16 %v499
    %v536 = vunpack.c.l.b16 %v500
    %v537 = vunpack.c.l.b16 %v501
    %v538 = vunpack.c.l.b16 %v502
    %v539 = vunpack.c.l.b16 %v503
    %v540 = vunpack.c.l.b16 %v504
    %v541 = vunpack.c.l.b16 %v505
    %v542 = vunpack.c.l.b16 %v506
    %v543 = vunpack.c.l.b16 %v507
    %v544 = vunpack.c.l.b16 %v508
    %v545 = vunpack.c.l.b16 %v509
    %v546 = vunpack.c.l.b16 %v510
    %v547 = vunpack.c.l.b16 %v511
    %v548 = vunpack.c.l.b16 %v512
    %v549 = vpack.c.b16 %v534, %v533
    %v550 = vpack.c.b16 %v536, %v535
    %v551 = vpack.c.b16 %v538, %v537
    %v552 = vpack.c.b16 %v540, %v539
    %v553 = vpack.c.b16 %v542, %v541
    %v554 = vpack.c.b16 %v544, %v543
    %v555 = vpack.c.b16 %v546, %v545
    %v556 = vpack.c.b16 %v548, %v547
    %565 = vmatprep.subr.bf16.mxu0 0
    %566 = vmatpush1.bf16.msra.mxu0 %v549
    %567 = vmatprep.subr.bf16.mxu0 0
    %568 = vmatpush1.bf16.msra.mxu0 %v550
    %569 = vmatprep.subr.bf16.mxu0 0
    %570 = vmatpush1.bf16.msra.mxu0 %v551
    %571 = vmatprep.subr.bf16.mxu0 0
    %572 = vmatpush1.bf16.msra.mxu0 %v552
    %573 = vmatprep.subr.bf16.mxu0 0
    %574 = vmatpush1.bf16.msra.mxu0 %v553
    %575 = vmatprep.subr.bf16.mxu0 0
    %576 = vmatpush1.bf16.msra.mxu0 %v554
    %577 = vmatprep.subr.bf16.mxu0 0
    %578 = vmatpush1.bf16.msra.mxu0 %v555
    %579 = vmatprep.subr.bf16.mxu0 0
    %580 = vmatpush1.bf16.msra.mxu0 %v556
    %581 = vmatprep.subr.bf16.mxu0 0
    %582 = vmatpush1.bf16.msra.mxu0 0
    %583 = vmatprep.subr.bf16.mxu0 0
    %584 = vmatpush1.bf16.msra.mxu0 0
    %585 = vmatprep.subr.bf16.mxu0 0
    %586 = vmatpush1.bf16.msra.mxu0 0
    %587 = vmatprep.subr.bf16.mxu0 0
    %588 = vmatpush1.bf16.msra.mxu0 0
    %589 = vmatprep.subr.bf16.mxu0 0
    %590 = vmatpush1.bf16.msra.mxu0 0
    %591 = vmatprep.subr.bf16.mxu0 0
    %592 = vmatpush1.bf16.msra.mxu0 0
    %593 = vmatprep.subr.bf16.mxu0 0
    %594 = vmatpush1.bf16.msra.mxu0 0
    %595 = vmatprep.subr.bf16.mxu0 0
    %596 = vmatpush1.bf16.msra.mxu0 0
    %597 = vmatprep.mubr.bf16.mxu0 0
    %598 = vmatmul.mubr.bf16.gmra.mrb[0].mxu0 %v386
    %v599 = vpop.f32.mrb[0].mxu0
    %v600 = vadd.f32 %v516, %v599
    %v601 = vpop.f32.mrb[0].mxu0
    %v602 = vpop.f32.mrb[0].mxu0
    %v603 = vpop.f32.mrb[0].mxu0
    %604 = vdwg.mxu0
    %605 = vadd.xlane.f32.xlu0 %v600
    %v606 = vpop.xlane.xlu0 %605
    %v607 = vmul.f32 %v606, 0.015625
    %v608 = vmul.f32 %v600, %v600
    %609 = vadd.xlane.f32.xlu0 %v608
    %v610 = vpop.xlane.xlu0 %609
    %v611 = vmul.f32 %v610, 0.015625
    %v612 = vmul.f32 %v607, %v607
    %v613 = vsub.f32 %v611, %v612
    %v614 = vmax.f32 %v613, 0.0
    %v615 = vadd.f32 %v614, 1e-05
    %v616 = vrsqrt.pop %v615
    %v617 = vlaneseq
    %v618 = vshrl.u32 %v617, 7
    %v619 = vsub.s32 1, %v618
    %v620 = vrot.slane %v58, %v619
    %v621 = vmul.f32 %v620, %v616
    %v622 = vmul.f32 %v600, %v621
    %v623 = vmul.f32 %v607, %v621
    %v624 = vlaneseq
    %v625 = vshrl.u32 %v624, 7
    %v626 = vsub.s32 2, %v625
    %v627 = vrot.slane %v58, %v626
    %v628 = vsub.f32 %v627, %v623
    %v629 = vadd.f32 %v622, %v628
    %v630 = vmax.f32 %v629, 0.0
    %v631 = vpack.c.bf16 %v630, %v630
    %s632 = scalar_lea.vmem [#allocation4], 256
    %v633 = vld [vmem:[%s632] sm:$0xf]
    %v634 = vld [vmem:[%s632 + $0x4] sm:$0xf]
    %v635 = vld [vmem:[%s632 + $0x8] sm:$0xf]
    %v636 = vld [vmem:[%s632 + $0xc] sm:$0xf]
    %v637 = vld [vmem:[%s632 + $0x10] sm:$0xf]
    %v638 = vld [vmem:[%s632 + $0x14] sm:$0xf]
    %v639 = vld [vmem:[%s632 + $0x18] sm:$0xf]
    %v640 = vld [vmem:[%s632 + $0x1c] sm:$0xf]
    %v641 = vld [vmem:[%s632 + $0x20] sm:$0xf]
    %v642 = vld [vmem:[%s632 + $0x24] sm:$0xf]
    %v643 = vld [vmem:[%s632 + $0x28] sm:$0xf]
    %v644 = vld [vmem:[%s632 + $0x2c] sm:$0xf]
    %v645 = vld [vmem:[%s632 + $0x30] sm:$0xf]
    %v646 = vld [vmem:[%s632 + $0x34] sm:$0xf]
    %v647 = vld [vmem:[%s632 + $0x38] sm:$0xf]
    %v648 = vld [vmem:[%s632 + $0x3c] sm:$0xf]
    %v649 = vlaneseq
    %v650 = vshrl.u32 %v649, 7
    %v651 = vsub.s32 3, %v650
    %v652 = vrot.slane %v58, %v651
    %v669 = vunpack.c.l.b16 %v633
    %v670 = vunpack.c.l.b16 %v634
    %v671 = vunpack.c.l.b16 %v635
    %v672 = vunpack.c.l.b16 %v636
    %v673 = vunpack.c.l.b16 %v637
    %v674 = vunpack.c.l.b16 %v638
    %v675 = vunpack.c.l.b16 %v639
    %v676 = vunpack.c.l.b16 %v640
    %v677 = vunpack.c.l.b16 %v641
    %v678 = vunpack.c.l.b16 %v642
    %v679 = vunpack.c.l.b16 %v643
    %v680 = vunpack.c.l.b16 %v644
    %v681 = vunpack.c.l.b16 %v645
    %v682 = vunpack.c.l.b16 %v646
    %v683 = vunpack.c.l.b16 %v647
    %v684 = vunpack.c.l.b16 %v648
    %v685 = vpack.c.b16 %v670, %v669
    %v686 = vpack.c.b16 %v672, %v671
    %v687 = vpack.c.b16 %v674, %v673
    %v688 = vpack.c.b16 %v676, %v675
    %v689 = vpack.c.b16 %v678, %v677
    %v690 = vpack.c.b16 %v680, %v679
    %v691 = vpack.c.b16 %v682, %v681
    %v692 = vpack.c.b16 %v684, %v683
    %701 = vmatprep.subr.bf16.mxu0 0
    %702 = vmatpush1.bf16.msra.mxu0 %v685
    %703 = vmatprep.subr.bf16.mxu0 0
    %704 = vmatpush1.bf16.msra.mxu0 %v686
    %705 = vmatprep.subr.bf16.mxu0 0
    %706 = vmatpush1.bf16.msra.mxu0 %v687
    %707 = vmatprep.subr.bf16.mxu0 0
    %708 = vmatpush1.bf16.msra.mxu0 %v688
    %709 = vmatprep.subr.bf16.mxu0 0
    %710 = vmatpush1.bf16.msra.mxu0 %v689
    %711 = vmatprep.subr.bf16.mxu0 0
    %712 = vmatpush1.bf16.msra.mxu0 %v690
    %713 = vmatprep.subr.bf16.mxu0 0
    %714 = vmatpush1.bf16.msra.mxu0 %v691
    %715 = vmatprep.subr.bf16.mxu0 0
    %716 = vmatpush1.bf16.msra.mxu0 %v692
    %717 = vmatprep.subr.bf16.mxu0 0
    %718 = vmatpush1.bf16.msra.mxu0 0
    %719 = vmatprep.subr.bf16.mxu0 0
    %720 = vmatpush1.bf16.msra.mxu0 0
    %721 = vmatprep.subr.bf16.mxu0 0
    %722 = vmatpush1.bf16.msra.mxu0 0
    %723 = vmatprep.subr.bf16.mxu0 0
    %724 = vmatpush1.bf16.msra.mxu0 0
    %725 = vmatprep.subr.bf16.mxu0 0
    %726 = vmatpush1.bf16.msra.mxu0 0
    %727 = vmatprep.subr.bf16.mxu0 0
    %728 = vmatpush1.bf16.msra.mxu0 0
    %729 = vmatprep.subr.bf16.mxu0 0
    %730 = vmatpush1.bf16.msra.mxu0 0
    %731 = vmatprep.subr.bf16.mxu0 0
    %732 = vmatpush1.bf16.msra.mxu0 0
    %733 = vmatprep.mubr.bf16.mxu0 0
    %734 = vmatmul.mubr.bf16.gmra.mrb[0].mxu0 %v631
    %v735 = vpop.f32.mrb[0].mxu0
    %v736 = vadd.f32 %v652, %v735
    %v737 = vpop.f32.mrb[0].mxu0
    %v738 = vpop.f32.mrb[0].mxu0
    %v739 = vpop.f32.mrb[0].mxu0
    %740 = vdwg.mxu0
    %741 = vadd.xlane.f32.xlu0 %v736
    %v742 = vpop.xlane.xlu0 %741
    %v743 = vmul.f32 %v742, 0.03125
    %v744 = vmul.f32 %v736, %v736
    %745 = vadd.xlane.f32.xlu0 %v744
    %v746 = vpop.xlane.xlu0 %745
    %v747 = vmul.f32 %v746, 0.03125
    %v748 = vmul.f32 %v743, %v743
    %v749 = vsub.f32 %v747, %v748
    %v750 = vmax.f32 %v749, 0.0
    %v751 = vadd.f32 %v750, 1e-05
    %v752 = vrsqrt.pop %v751
    %v753 = vlaneseq
    %v754 = vshrl.u32 %v753, 7
    %v755 = vsub.s32 4, %v754
    %v756 = vrot.slane %v58, %v755
    %v757 = vmul.f32 %v756, %v752
    %v758 = vmul.f32 %v736, %v757
    %v759 = vmul.f32 %v743, %v757
    %v760 = vlaneseq
    %v761 = vshrl.u32 %v760, 7
    %v762 = vsub.s32 5, %v761
    %v763 = vrot.slane %v58, %v762
    %v764 = vsub.f32 %v763, %v759
    %v765 = vadd.f32 %v758, %v764
    %v766 = vmax.f32 %v765, 0.0
    %v767 = vpack.c.bf16 %v766, %v766
    %s768 = scalar_lea.vmem [#allocation4], 320
    %v769 = vld [vmem:[%s768] sm:$0xf]
    %v770 = vld [vmem:[%s768 + $0x4] sm:$0xf]
    %v771 = vld [vmem:[%s768 + $0x8] sm:$0xf]
    %v772 = vld [vmem:[%s768 + $0xc] sm:$0xf]
    %v773 = vld [vmem:[%s768 + $0x10] sm:$0xf]
    %v774 = vld [vmem:[%s768 + $0x14] sm:$0xf]
    %v775 = vld [vmem:[%s768 + $0x18] sm:$0xf]
    %v776 = vld [vmem:[%s768 + $0x1c] sm:$0xf]
    %v777 = vld [vmem:[%s768 + $0x20] sm:$0xf]
    %v778 = vld [vmem:[%s768 + $0x24] sm:$0xf]
    %v779 = vld [vmem:[%s768 + $0x28] sm:$0xf]
    %v780 = vld [vmem:[%s768 + $0x2c] sm:$0xf]
    %v781 = vld [vmem:[%s768 + $0x30] sm:$0xf]
    %v782 = vld [vmem:[%s768 + $0x34] sm:$0xf]
    %v783 = vld [vmem:[%s768 + $0x38] sm:$0xf]
    %v784 = vld [vmem:[%s768 + $0x3c] sm:$0xf]
    %v785 = vlaneseq
    %v786 = vshrl.u32 %v785, 7
    %v787 = vsub.s32 6, %v786
    %v788 = vrot.slane %v58, %v787
    %v805 = vunpack.c.l.b16 %v769
    %v806 = vunpack.c.l.b16 %v770
    %v807 = vunpack.c.l.b16 %v771
    %v808 = vunpack.c.l.b16 %v772
    %v809 = vunpack.c.l.b16 %v773
    %v810 = vunpack.c.l.b16 %v774
    %v811 = vunpack.c.l.b16 %v775
    %v812 = vunpack.c.l.b16 %v776
    %v813 = vunpack.c.l.b16 %v777
    %v814 = vunpack.c.l.b16 %v778
    %v815 = vunpack.c.l.b16 %v779
    %v816 = vunpack.c.l.b16 %v780
    %v817 = vunpack.c.l.b16 %v781
    %v818 = vunpack.c.l.b16 %v782
    %v819 = vunpack.c.l.b16 %v783
    %v820 = vunpack.c.l.b16 %v784
    %v821 = vpack.c.b16 %v806, %v805
    %v822 = vpack.c.b16 %v808, %v807
    %v823 = vpack.c.b16 %v810, %v809
    %v824 = vpack.c.b16 %v812, %v811
    %v825 = vpack.c.b16 %v814, %v813
    %v826 = vpack.c.b16 %v816, %v815
    %v827 = vpack.c.b16 %v818, %v817
    %v828 = vpack.c.b16 %v820, %v819
    %837 = vmatprep.subr.bf16.mxu0 0
    %838 = vmatpush1.bf16.msra.mxu0 %v821
    %839 = vmatprep.subr.bf16.mxu0 0
    %840 = vmatpush1.bf16.msra.mxu0 %v822
    %841 = vmatprep.subr.bf16.mxu0 0
    %842 = vmatpush1.bf16.msra.mxu0 %v823
    %843 = vmatprep.subr.bf16.mxu0 0
    %844 = vmatpush1.bf16.msra.mxu0 %v824
    %845 = vmatprep.subr.bf16.mxu0 0
    %846 = vmatpush1.bf16.msra.mxu0 %v825
    %847 = vmatprep.subr.bf16.mxu0 0
    %848 = vmatpush1.bf16.msra.mxu0 %v826
    %849 = vmatprep.subr.bf16.mxu0 0
    %850 = vmatpush1.bf16.msra.mxu0 %v827
    %851 = vmatprep.subr.bf16.mxu0 0
    %852 = vmatpush1.bf16.msra.mxu0 %v828
    %853 = vmatprep.subr.bf16.mxu0 0
    %854 = vmatpush1.bf16.msra.mxu0 0
    %855 = vmatprep.subr.bf16.mxu0 0
    %856 = vmatpush1.bf16.msra.mxu0 0
    %857 = vmatprep.subr.bf16.mxu0 0
    %858 = vmatpush1.bf16.msra.mxu0 0
    %859 = vmatprep.subr.bf16.mxu0 0
    %860 = vmatpush1.bf16.msra.mxu0 0
    %861 = vmatprep.subr.bf16.mxu0 0
    %862 = vmatpush1.bf16.msra.mxu0 0
    %863 = vmatprep.subr.bf16.mxu0 0
    %864 = vmatpush1.bf16.msra.mxu0 0
    %865 = vmatprep.subr.bf16.mxu0 0
    %866 = vmatpush1.bf16.msra.mxu0 0
    %867 = vmatprep.subr.bf16.mxu0 0
    %868 = vmatpush1.bf16.msra.mxu0 0
    %869 = vmatprep.mubr.bf16.mxu0 0
    %870 = vmatmul.mubr.bf16.gmra.mrb[0].mxu0 %v767
    %v871 = vpop.f32.mrb[0].mxu0
    %v872 = vadd.f32 %v788, %v871
    %v873 = vpop.f32.mrb[0].mxu0
    %v874 = vpop.f32.mrb[0].mxu0
    %v875 = vpop.f32.mrb[0].mxu0
    %876 = vdwg.mxu0
    %v877 = vadd.f32 %v491, %v872
    %878 = vst.msk [vmem:[%s4] sm:$0xff] %vm66, %v877
    // Predicated region
    $region30: #{_lambda_.1} parent=1 // pred_check
      _
    $region31: #{_lambda_.1} parent=1 // pred_check_branch
      %880 = sbr.rel (0) target = $region33
    $region32: #{_lambda_.1} parent=1 // pred_region
      _
    $region33: #{_lambda_.1} parent=1 // pred_fallthru
      _
    // Predicated region
    $region34: #{_lambda_.1} parent=1 // pred_check
      _
    $region35: #{_lambda_.1} parent=1 // pred_check_branch
      %882 = sbr.rel (0) target = $region37
    $region36: #{_lambda_.1} parent=1 // pred_region
      _
    $region37: #{_lambda_.1} parent=1 // pred_fallthru
      _
    %883 = vsyncpa [#allocation3], 1
    %884 = vsyncpa [#allocation5], 1

</llo_original>
